<compile_context>
chip_gen: v7x
topology: tpu7x:2x2x1
jax: 0.10.0
libtpu: 0.0.40
codegen_flags: <defaults>
</compile_context>

<pallas_src>
import functools
import numpy as np
import jax
import jax.numpy as jnp
from jax.experimental import pallas as pl
from jax.experimental.pallas import tpu as pltpu

MXU_DTYPE = jnp.bfloat16      # matmul operand dtype (accumulation stays f32)
MASK_VALUE = -1e30            # finite mask value (diagonal is always unmasked)
_ATTN_VMEM_LIMIT = 32 * 1024 * 1024   # working set ~1-2 MiB; leaves headroom on v7x


def _tpu_vmem_capacity():
    try:
        return int(pltpu.get_tpu_info().vmem_capacity_bytes)
    except Exception:
        return 64 << 20       # conservative (v7x-sized)


_BIG_VMEM = _tpu_vmem_capacity() >= (100 << 20)          # v5e/v6e: 128 MiB; v7x: 64 MiB
_ROW_TILE_PREFS = (512, 256, 128) if _BIG_VMEM else (256, 128)
_ATTN_Q_PREFS = (256, 128)
_ATTN_K_PREFS = (512, 256, 128)


def _round_up(n, m):
    return ((n + m - 1) // m) * m


def _pick_tile(n, prefs):
    for p in prefs:
        if n % p == 0:
            return p
    return n


# ------------------------- fused pointwise / matmul kernels -------------------------

def _ln_linear_kernel(x_ref, g_ref, b_ref, w_ref, wb_ref, o_ref, *, eps):
    x = x_ref[...].astype(jnp.float32)
    mu = jnp.mean(x, axis=-1, keepdims=True)
    xc = x - mu
    var = jnp.mean(xc * xc, axis=-1, keepdims=True)
    xn = xc * jax.lax.rsqrt(var + eps) * g_ref[...] + b_ref[...]
    y = jnp.dot(xn.astype(w_ref.dtype), w_ref[...], preferred_element_type=jnp.float32)
    o_ref[...] = (y + wb_ref[...]).astype(o_ref.dtype)


def ln_linear(x, g, b, w, wb, *, eps=1e-5, out_dtype=jnp.float32):
    N, C = x.shape
    Cout = w.shape[1]
    TR = _pick_tile(N, _ROW_TILE_PREFS)
    return pl.pallas_call(
        functools.partial(_ln_linear_kernel, eps=eps),
        out_shape=jax.ShapeDtypeStruct((N, Cout), out_dtype),
        grid=(N // TR,),
        in_specs=[pl.BlockSpec((TR, C), lambda i: (i, 0)),
                  pl.BlockSpec((1, C), lambda i: (0, 0)),
                  pl.BlockSpec((1, C), lambda i: (0, 0)),
                  pl.BlockSpec((C, Cout), lambda i: (0, 0)),
                  pl.BlockSpec((1, Cout), lambda i: (0, 0))],
        out_specs=pl.BlockSpec((TR, Cout), lambda i: (i, 0)),
        compiler_params=pltpu.CompilerParams(dimension_semantics=("parallel",)),
    )(x, g.reshape(1, C), b.reshape(1, C), w.astype(MXU_DTYPE), wb.reshape(1, Cout))


def _linear_residual_kernel(x_ref, w_ref, wb_ref, res_ref, o_ref):
    y = jnp.dot(x_ref[...].astype(w_ref.dtype), w_ref[...],
                preferred_element_type=jnp.float32) + wb_ref[...]
    o_ref[...] = (res_ref[...] + y).astype(o_ref.dtype)


def linear_residual(x, w, wb, res):
    N, C = x.shape
    Cout = w.shape[1]
    TR = _pick_tile(N, _ROW_TILE_PREFS)
    return pl.pallas_call(
        _linear_residual_kernel,
        out_shape=jax.ShapeDtypeStruct((N, Cout), jnp.float32),
        grid=(N // TR,),
        in_specs=[pl.BlockSpec((TR, C), lambda i: (i, 0)),
                  pl.BlockSpec((C, Cout), lambda i: (0, 0)),
                  pl.BlockSpec((1, Cout), lambda i: (0, 0)),
                  pl.BlockSpec((TR, Cout), lambda i: (i, 0))],
        out_specs=pl.BlockSpec((TR, Cout), lambda i: (i, 0)),
        compiler_params=pltpu.CompilerParams(dimension_semantics=("parallel",)),
    )(x, w.astype(MXU_DTYPE), wb.reshape(1, Cout), res)


def _erf_approx(x):
    # Abramowitz & Stegun 7.1.26, |err| <= 1.5e-7 -> f32-exact GELU without relying
    # on an erf lowering inside the kernel.
    a1, a2, a3, a4, a5 = 0.254829592, -0.284496736, 1.421413741, -1.453152027, 1.061405429
    p = 0.3275911
    s = jnp.where(x < 0.0, -1.0, 1.0)
    ax = jnp.abs(x)
    t = 1.0 / (1.0 + p * ax)
    poly = (((((a5 * t + a4) * t) + a3) * t + a2) * t + a1) * t
    return s * (1.0 - poly * jnp.exp(-ax * ax))


def _ln_mlp_res_kernel(x_ref, g_ref, b_ref, w1_ref, b1_ref, w2_ref, b2_ref, o_ref, *, eps):
    x = x_ref[...].astype(jnp.float32)
    mu = jnp.mean(x, axis=-1, keepdims=True)
    xc = x - mu
    var = jnp.mean(xc * xc, axis=-1, keepdims=True)
    xn = xc * jax.lax.rsqrt(var + eps) * g_ref[...] + b_ref[...]
    h = jnp.dot(xn.astype(w1_ref.dtype), w1_ref[...],
                preferred_element_type=jnp.float32) + b1_ref[...]
    h = 0.5 * h * (1.0 + _erf_approx(h * (1.0 / np.sqrt(2.0))))   # exact (erf) GELU
    y = jnp.dot(h.astype(w2_ref.dtype), w2_ref[...],
                preferred_element_type=jnp.float32) + b2_ref[...]
    o_ref[...] = (x_ref[...] + y).astype(o_ref.dtype)


def ln_mlp_residual(x, g, b, w1, b1, w2, b2, *, eps=1e-5):
    # TODO(synk): fc1/fc2 weights are kept as full VMEM blocks; K-tile them for very
    # large hidden sizes.
    N, C = x.shape
    Hd = w1.shape[1]
    TR = _pick_tile(N, _ROW_TILE_PREFS)
    return pl.pallas_call(
        functools.partial(_ln_mlp_res_kernel, eps=eps),
        out_shape=jax.ShapeDtypeStruct((N, C), jnp.float32),
        grid=(N // TR,),
        in_specs=[pl.BlockSpec((TR, C), lambda i: (i, 0)),
                  pl.BlockSpec((1, C), lambda i: (0, 0)),
                  pl.BlockSpec((1, C), lambda i: (0, 0)),
                  pl.BlockSpec((C, Hd), lambda i: (0, 0)),
                  pl.BlockSpec((1, Hd), lambda i: (0, 0)),
                  pl.BlockSpec((Hd, C), lambda i: (0, 0)),
                  pl.BlockSpec((1, C), lambda i: (0, 0))],
        out_specs=pl.BlockSpec((TR, C), lambda i: (i, 0)),
        compiler_params=pltpu.CompilerParams(dimension_semantics=("parallel",)),
    )(x, g.reshape(1, C), b.reshape(1, C),
      w1.astype(MXU_DTYPE), b1.reshape(1, Hd),
      w2.astype(MXU_DTYPE), b2.reshape(1, C))


# ------------------------- flash window-attention kernel -------------------------

def _attn_kernel(widq_ref, widk_ref, pq_ref, pkT_ref, q_ref, k_ref, v_ref,
                 tq_ref, tk_ref, tv_ref, o_ref,
                 m_sc, l_sc, acc_sc, s_sc,
                 *, L, window_size, quant_size, radial_a, mask_value):
    Hb, _, hd = q_ref.shape
    kv_id = pl.program_id(1)

    @pl.when(kv_id == 0)
    def _init():
        m_sc[...] = jnp.full(m_sc.shape, -jnp.inf, m_sc.dtype)
        l_sc[...] = jnp.zeros(l_sc.shape, l_sc.dtype)
        acc_sc[...] = jnp.zeros(acc_sc.shape, acc_sc.dtype)
        s_sc[...] = jnp.zeros(s_sc.shape, s_sc.dtype)

    # same-window & same-batch mask from ONE fused int32 window id per point
    same = widq_ref[...] == widk_ref[...]                          # [TQ, TK]

    # quantized relative-position bins rebuilt in-kernel from per-tile coords
    pq = pq_ref[...]                                               # [TQ, 3]
    pk = pkT_ref[...]                                              # [3, TK]
    idxs = []
    for d in range(3):
        rel = pq[:, d:d + 1] - pk[d:d + 1, :]                      # [TQ, TK]
        if radial_a is not None and d == 2:
            a = radial_a
            rel_abs = jnp.abs(rel)
            flag = (rel >= 0.0).astype(jnp.float32)
            e = 2.0 * jnp.floor(jnp.log((rel_abs + 2.0 * a) / a) * (1.0 / np.log(2.0))) - 2.0
            e = e + ((3.0 * jnp.exp(jnp.floor(e * 0.5) * np.log(2.0)) - 2.0) * a
                     <= rel_abs).astype(jnp.float32)
            e = e * (2.0 * flag - 1.0) + (flag - 1.0)
            bin_d = e.astype(jnp.int32) + 24
        else:
            bin_d = jnp.floor((rel + window_size[d]) * (1.0 / quant_size[d])).astype(jnp.int32)
        idxs.append(jnp.clip(bin_d, 0, L - 1))

    # contextual rel-pos q/k tables gathered per tile on the MXU (no [H,N,N] in HBM)
    q = q_ref[...]                                                 # [Hb, TQ, hd] bf16
    k = k_ref[...]                                                 # [Hb, TK, hd] bf16
    cq = jax.lax.dot_general(q, tq_ref[...], (((2,), (2,)), ((0,), (0,))),
                             preferred_element_type=jnp.float32)   # [Hb, TQ, 3L]
    ck = jax.lax.dot_general(tk_ref[...], k, (((2,), (2,)), ((0,), (0,))),
                             preferred_element_type=jnp.float32)   # [Hb, 3L, TK]

    logits = jax.lax.dot_general(q, k, (((2,), (2,)), ((0,), (0,))),
                                 preferred_element_type=jnp.float32)  # [Hb, TQ, TK]

    # head-stacked, fully unrolled bin loop: contextual q/k bias term
    for d in range(3):
        idx_d = idxs[d]
        for b in range(L):
            c = d * L + b
            hit = idx_d == b
            add = cq[:, :, c:c + 1] + ck[:, c:c + 1, :]            # [Hb, TQ, TK]
            logits = logits + jnp.where(hit[None], add, 0.0)

    logits = jnp.where(same[None], logits, mask_value)

    # head-stacked online softmax
    m_prev = m_sc[...]
    m_new = jnp.maximum(m_prev, jnp.max(logits, axis=-1, keepdims=True))
    alpha = jnp.exp(m_prev - m_new)
    p = jnp.exp(logits - m_new)                                    # [Hb, TQ, TK] f32
    l_sc[...] = alpha * l_sc[...] + jnp.sum(p, axis=-1, keepdims=True)
    acc_sc[...] = alpha * acc_sc[...] + jax.lax.dot_general(
        p.astype(v_ref.dtype), v_ref[...], (((2,), (1,)), ((0,), (0,))),
        preferred_element_type=jnp.float32)
    m_sc[...] = m_new

    # contextual rel-pos value term: scatter p into quantized bins, kept in VMEM only
    s_sc[...] = s_sc[...] * alpha[None]
    lane_l = jax.lax.broadcasted_iota(jnp.int32, (1, 1, L), 2)
    onehots = [(lane_l == b).astype(jnp.float32) for b in range(L)]
    for d in range(3):
        idx_d = idxs[d]
        for b in range(L):
            hit = idx_d == b
            col = jnp.sum(jnp.where(hit[None], p, 0.0), axis=-1, keepdims=True)  # [Hb,TQ,1]
            s_sc[d] = s_sc[d] + col * onehots[b]

    @pl.when(kv_id == pl.num_programs(1) - 1)
    def _finalize():
        inv_l = pl.reciprocal(l_sc[...], approx=True)              # [Hb, TQ, 1]
        tv = tv_ref[...]                                           # [3, Hb, L, hd]
        s_all = s_sc[...]                                          # [3, Hb, TQ, L]
        acc = acc_sc[...]                                          # [Hb, TQ, hd]
        for h in range(Hb):
            pe = acc[h]
            for d in range(3):
                pe = pe + jnp.dot(s_all[d, h].astype(tv.dtype), tv[d, h],
                                  preferred_element_type=jnp.float32)
            o_ref[:, h * hd:(h + 1) * hd] = (pe * inv_l[h]).astype(o_ref.dtype)


def branch_attention(qh, kh, vh, wid, coords, Tq, Tk, Tv, *,
                     window_size, quant_size, radial_a):
    """qh/kh/vh: [Hb, N, hd] bf16 (q pre-scaled); wid: [N] int32 fused window id;
    coords: [N, 3] f32; tables: [L, 3, Hb, hd] f32.  Returns [N, Hb*hd] bf16."""
    Hb, N, hd = qh.shape
    L = Tq.shape[0]
    TQ = _pick_tile(N, _ATTN_Q_PREFS)
    TK = _pick_tile(N, _ATTN_K_PREFS)

    # tiny table rearrangements (once): tq/tk head-major [Hb, 3L, hd], tv [3, Hb, L, hd]
    tq_tab = jnp.transpose(Tq, (2, 1, 0, 3)).reshape(Hb, 3 * L, hd).astype(MXU_DTYPE)
    tk_tab = jnp.transpose(Tk, (2, 1, 0, 3)).reshape(Hb, 3 * L, hd).astype(MXU_DTYPE)
    tv_tab = jnp.transpose(Tv, (1, 2, 0, 3)).astype(MXU_DTYPE)

    widq = wid.reshape(N, 1)
    widk = wid.reshape(1, N)
    pq = coords
    pkT = coords.T

    kern = functools.partial(
        _attn_kernel, L=L,
        window_size=tuple(float(x) for x in window_size),
        quant_size=tuple(float(x) for x in quant_size),
        radial_a=(None if radial_a is None else float(radial_a)),
        mask_value=MASK_VALUE)

    return pl.pallas_call(
        kern,
        out_shape=jax.ShapeDtypeStruct((N, Hb * hd), MXU_DTYPE),
        grid=(N // TQ, N // TK),
        in_specs=[
            pl.BlockSpec((TQ, 1), lambda qi, ki: (qi, 0)),
            pl.BlockSpec((1, TK), lambda qi, ki: (0, ki)),
            pl.BlockSpec((TQ, 3), lambda qi, ki: (qi, 0)),
            pl.BlockSpec((3, TK), lambda qi, ki: (0, ki)),
            pl.BlockSpec((Hb, TQ, hd), lambda qi, ki: (0, qi, 0)),
            pl.BlockSpec((Hb, TK, hd), lambda qi, ki: (0, ki, 0)),
            pl.BlockSpec((Hb, TK, hd), lambda qi, ki: (0, ki, 0)),
            pl.BlockSpec((Hb, 3 * L, hd), lambda qi, ki: (0, 0, 0)),
            pl.BlockSpec((Hb, 3 * L, hd), lambda qi, ki: (0, 0, 0)),
            pl.BlockSpec((3, Hb, L, hd), lambda qi, ki: (0, 0, 0, 0)),
        ],
        out_specs=pl.BlockSpec((TQ, Hb * hd), lambda qi, ki: (qi, 0)),
        scratch_shapes=[
            pltpu.VMEM((Hb, TQ, 1), jnp.float32),     # running max
            pltpu.VMEM((Hb, TQ, 1), jnp.float32),     # running denom
            pltpu.VMEM((Hb, TQ, hd), jnp.float32),    # output accumulator
            pltpu.VMEM((3, Hb, TQ, L), jnp.float32),  # rel-pos value bin scatter
        ],
        compiler_params=pltpu.CompilerParams(
            dimension_semantics=("parallel", "arbitrary"),
            vmem_limit_bytes=_ATTN_VMEM_LIMIT),
    )(widq, widk, pq, pkT, qh, kh, vh, tq_tab, tk_tab, tv_tab)


# ------------------------- JAX glue: spherical coords, window ids -------------------------

def cart2sphere(xyz):
    x, y, z = xyz[:, 0], xyz[:, 1], xyz[:, 2]
    theta = (jnp.arctan2(y, x) + np.pi) * 180.0 / np.pi
    beta = jnp.arctan2(jnp.sqrt(x ** 2 + y ** 2), z) * 180.0 / np.pi
    r = jnp.sqrt(x ** 2 + y ** 2 + z ** 2)
    return jnp.stack([theta, beta, r], -1)


def fused_window_id(coords, batch, window_size):
    """Collision-free fused (batch, window-cell) id per point via mixed-radix packing.
    TODO(synk): assumes n_batches * prod(window extents) < 2**31."""
    ws = jnp.asarray(window_size, jnp.float32)
    win = jnp.floor(coords / ws[None, :]).astype(jnp.int32)
    win = win - jnp.min(win, axis=0, keepdims=True)
    ext = jnp.max(win, axis=0) + 1
    b = batch.astype(jnp.int32)
    return ((b * ext[0] + win[:, 0]) * ext[1] + win[:, 1]) * ext[2] + win[:, 2]


# ------------------------- SphereFormer forward -------------------------

def sphereformer_forward(params, cfg, feats, xyz, batch):
    N, C = feats.shape
    H = cfg['num_heads']
    hd = C // H
    Hb1 = H // 2
    scale = hd ** (-0.5)

    # pad the point count to a multiple of 128 so every kernel keeps (8,128)-aligned,
    # pipelined tiles (no full-N tile fallback); padded rows are masked out / sliced off.
    N_pad = _round_up(N, 128)
    pad = N_pad - N
    feats_p = jnp.pad(feats, ((0, pad), (0, 0)))
    xyz_p = jnp.pad(xyz, ((0, pad), (0, 0)))
    batch_p = jnp.pad(batch.astype(jnp.int32), ((0, pad),))
    valid = jnp.arange(N_pad, dtype=jnp.int32) < N

    # fold the q scaling into the qkv projection (first C output columns)
    col_scale = jnp.concatenate([jnp.full((C,), scale, jnp.float32),
                                 jnp.ones((2 * C,), jnp.float32)])
    qkv_w = params['qkv_w'] * col_scale[None, :]
    qkv_b = params['qkv_b'] * col_scale

    # fused LayerNorm + qkv projection; emitted in bf16 (only consumed as MXU operands)
    qkv = ln_linear(feats_p, params['norm1_g'], params['norm1_b'], qkv_w, qkv_b,
                    out_dtype=MXU_DTYPE)
    qkv = qkv.reshape(N_pad, 3, H, hd)
    qh = jnp.transpose(qkv[:, 0], (1, 0, 2))          # [H, N_pad, hd] bf16
    kh = jnp.transpose(qkv[:, 1], (1, 0, 2))
    vh = jnp.transpose(qkv[:, 2], (1, 0, 2))

    xyz_sphere = cart2sphere(xyz_p)
    ws = np.asarray(cfg['window_size'], np.float32)
    qs = np.asarray(cfg['quant_size'], np.float32)
    ws_s = np.asarray(cfg['window_size_sphere'], np.float32)
    qs_s = np.asarray(cfg['quant_size_sphere'], np.float32)

    # one fused int32 window id per point; padded points get -1 (never match real ids)
    wid_c = jnp.where(valid, fused_window_id(xyz_p, batch_p, ws), -1)
    wid_s = jnp.where(valid, fused_window_id(xyz_sphere, batch_p, ws_s), -1)

    out1 = branch_attention(qh[:Hb1], kh[:Hb1], vh[:Hb1], wid_c, xyz_p,
                            params['rel_q_table'], params['rel_k_table'],
                            params['rel_v_table'],
                            window_size=ws, quant_size=qs, radial_a=None)
    out2 = branch_attention(qh[Hb1:], kh[Hb1:], vh[Hb1:], wid_s, xyz_sphere,
                            params['rel_q_table_s'], params['rel_k_table_s'],
                            params['rel_v_table_s'],
                            window_size=ws_s, quant_size=qs_s, radial_a=cfg['a'])
    attn = jnp.concatenate([out1, out2], axis=-1)      # [N_pad, C] bf16

    # proj + first residual (drop_path = Identity), then LN2 + MLP + second residual
    feats_p = linear_residual(attn, params['proj_w'], params['proj_b'], feats_p)
    out = ln_mlp_residual(feats_p, params['norm2_g'], params['norm2_b'],
                          params['fc1_w'], params['fc1_b'],
                          params['fc2_w'], params['fc2_b'])
    return out[:N]


# ------------------------- deterministic parameter init -------------------------

def init_params(key, dim, num_heads, quant_grid_length, quant_grid_length_sphere, mlp_ratio=4.0):
    hd = dim // num_heads
    Hb1 = num_heads // 2
    Hb2 = num_heads - Hb1
    hidden = int(dim * mlp_ratio)
    ks = jax.random.split(key, 10)

    def tn(k, shape, std=0.02):
        return std * jax.random.truncated_normal(k, -2.0, 2.0, shape, jnp.float32)

    return {
        'norm1_g': jnp.ones((dim,), jnp.float32),
        'norm1_b': jnp.zeros((dim,), jnp.float32),
        'norm2_g': jnp.ones((dim,), jnp.float32),
        'norm2_b': jnp.zeros((dim,), jnp.float32),
        'qkv_w': tn(ks[0], (dim, 3 * dim)),
        'qkv_b': jnp.zeros((3 * dim,), jnp.float32),
        'proj_w': tn(ks[1], (dim, dim)),
        'proj_b': jnp.zeros((dim,), jnp.float32),
        'fc1_w': tn(ks[2], (dim, hidden)),
        'fc1_b': jnp.zeros((hidden,), jnp.float32),
        'fc2_w': tn(ks[3], (hidden, dim)),
        'fc2_b': jnp.zeros((dim,), jnp.float32),
        'rel_q_table': tn(ks[4], (2 * quant_grid_length - 1, 3, Hb1, hd)),
        'rel_k_table': tn(ks[5], (2 * quant_grid_length - 1, 3, Hb1, hd)),
        'rel_v_table': tn(ks[6], (2 * quant_grid_length - 1, 3, Hb1, hd)),
        'rel_q_table_s': tn(ks[7], (2 * quant_grid_length_sphere, 3, Hb2, hd)),
        'rel_k_table_s': tn(ks[8], (2 * quant_grid_length_sphere, 3, Hb2, hd)),
        'rel_v_table_s': tn(ks[9], (2 * quant_grid_length_sphere, 3, Hb2, hd)),
    }


if __name__ == "__main__":
    dim = 32
    num_heads = 4
    N = 64
    window_size = [2.0, 2.0, 2.0]
    quant_size = [0.25, 0.25, 0.25]
    window_size_sphere = [120.0, 120.0, 80.0]
    quant_size_sphere = [5.0, 5.0, 2.0]
    a = 0.05 * 0.25
    quant_grid_length = int((window_size[0] + 1e-4) / quant_size[0])                       # 8
    quant_grid_length_sphere = int((window_size_sphere[0] + 1e-4) / quant_size_sphere[0])  # 24

    key = jax.random.PRNGKey(0)
    kp, kf, kx = jax.random.split(key, 3)
    params = init_params(kp, dim, num_heads, quant_grid_length, quant_grid_length_sphere)
    feats = jax.random.normal(kf, (N, dim), jnp.float32)
    xyz = jax.random.uniform(kx, (N, 3), jnp.float32, minval=-2.0, maxval=2.0)
    batch = jnp.concatenate([jnp.zeros((N // 2,), jnp.int32),
                             jnp.ones((N - N // 2,), jnp.int32)])

    cfg = dict(num_heads=num_heads, window_size=window_size, quant_size=quant_size,
               window_size_sphere=window_size_sphere, quant_size_sphere=quant_size_sphere,
               quant_grid_length=quant_grid_length,
               quant_grid_length_sphere=quant_grid_length_sphere, a=a)

    out = sphereformer_forward(params, cfg, feats, xyz, batch)
    out = jax.block_until_ready(out)
    assert out.shape == (N, dim) and out.dtype == jnp.float32
    assert bool(jnp.all(jnp.isfinite(out)))
    print("KERNEL_OK")
</pallas_src>

<mosaic_0001>
module attributes {stable_mosaic.version = 11 : i64} {
  func.func @_ln_linear_kernel(%arg0: i32, %arg1: memref<128x32xf32, #tpu.memory_space<vmem>>, %arg2: memref<1x32xf32, #tpu.memory_space<vmem>>, %arg3: memref<1x32xf32, #tpu.memory_space<vmem>>, %arg4: memref<32x96xbf16, #tpu.memory_space<vmem>>, %arg5: memref<1x96xf32, #tpu.memory_space<vmem>>, %arg6: memref<128x96xbf16, #tpu.memory_space<vmem>>) attributes {dimension_semantics = [#tpu.dimension_semantics<parallel>], iteration_bounds = array<i64: 1>, scalar_prefetch = 0 : i64, scratch_operands = 0 : i64, tpu.core_type = #tpu.core_type<tc>, window_params = [{transform_indices = @transform_0, window_bounds = array<i64: 128, 32>}, {pipeline_mode = #tpu.pipeline_mode<synchronous>, transform_indices = @transform_1, window_bounds = array<i64: 1, 32>}, {pipeline_mode = #tpu.pipeline_mode<synchronous>, transform_indices = @transform_2, window_bounds = array<i64: 1, 32>}, {pipeline_mode = #tpu.pipeline_mode<synchronous>, transform_indices = @transform_3, window_bounds = array<i64: 32, 96>}, {pipeline_mode = #tpu.pipeline_mode<synchronous>, transform_indices = @transform_4, window_bounds = array<i64: 1, 96>}, {transform_indices = @transform_5, window_bounds = array<i64: 128, 96>}]} {
    %c0 = arith.constant 0 : index
    %c0_0 = arith.constant 0 : index
    %0 = vector.load %arg1[%c0, %c0_0] : memref<128x32xf32, #tpu.memory_space<vmem>>, vector<128x32xf32>
    %cst = arith.constant dense<0.000000e+00> : vector<128xf32>
    %1 = vector.multi_reduction <add>, %0, %cst [1] : vector<128x32xf32> to vector<128xf32>
    %2 = vector.shape_cast %1 : vector<128xf32> to vector<128x1xf32>
    %cst_1 = arith.constant 3.200000e+01 : f32
    %3 = vector.broadcast %cst_1 : f32 to vector<128x1xf32>
    %4 = arith.divf %2, %3 : vector<128x1xf32>
    %5 = vector.broadcast %4 : vector<128x1xf32> to vector<128x32xf32>
    %6 = arith.subf %0, %5 : vector<128x32xf32>
    %7 = arith.mulf %6, %6 : vector<128x32xf32>
    %cst_2 = arith.constant dense<0.000000e+00> : vector<128xf32>
    %8 = vector.multi_reduction <add>, %7, %cst_2 [1] : vector<128x32xf32> to vector<128xf32>
    %9 = vector.shape_cast %8 : vector<128xf32> to vector<128x1xf32>
    %cst_3 = arith.constant 3.200000e+01 : f32
    %10 = vector.broadcast %cst_3 : f32 to vector<128x1xf32>
    %11 = arith.divf %9, %10 : vector<128x1xf32>
    %cst_4 = arith.constant 9.99999974E-6 : f32
    %12 = vector.broadcast %cst_4 : f32 to vector<128x1xf32>
    %13 = arith.addf %11, %12 : vector<128x1xf32>
    %14 = math.rsqrt %13 : vector<128x1xf32>
    %15 = vector.broadcast %14 : vector<128x1xf32> to vector<128x32xf32>
    %16 = arith.mulf %6, %15 : vector<128x32xf32>
    %c0_5 = arith.constant 0 : index
    %c0_6 = arith.constant 0 : index
    %17 = vector.load %arg2[%c0_5, %c0_6] : memref<1x32xf32, #tpu.memory_space<vmem>>, vector<1x32xf32>
    %18 = vector.broadcast %17 : vector<1x32xf32> to vector<128x32xf32>
    %19 = arith.mulf %16, %18 : vector<128x32xf32>
    %c0_7 = arith.constant 0 : index
    %c0_8 = arith.constant 0 : index
    %20 = vector.load %arg3[%c0_7, %c0_8] : memref<1x32xf32, #tpu.memory_space<vmem>>, vector<1x32xf32>
    %21 = vector.broadcast %20 : vector<1x32xf32> to vector<128x32xf32>
    %22 = arith.addf %19, %21 : vector<128x32xf32>
    %23 = arith.truncf %22 : vector<128x32xf32> to vector<128x32xbf16>
    %c0_9 = arith.constant 0 : index
    %c0_10 = arith.constant 0 : index
    %24 = vector.load %arg4[%c0_9, %c0_10] : memref<32x96xbf16, #tpu.memory_space<vmem>>, vector<32x96xbf16>
    %cst_11 = arith.constant dense<0.000000e+00> : vector<128x96xf32>
    %25 = tpu.matmul %23, %24, %cst_11 {dimension_numbers = #tpu.dot_dimension_numbers<[1], [0], [0], [1], [0, 0, 1, 1], [], []>} : vector<128x32xbf16>, vector<32x96xbf16>, vector<128x96xf32> -> vector<128x96xf32>
    %c0_12 = arith.constant 0 : index
    %c0_13 = arith.constant 0 : index
    %26 = vector.load %arg5[%c0_12, %c0_13] : memref<1x96xf32, #tpu.memory_space<vmem>>, vector<1x96xf32>
    %27 = vector.broadcast %26 : vector<1x96xf32> to vector<128x96xf32>
    %28 = arith.addf %25, %27 : vector<128x96xf32>
    %29 = arith.truncf %28 : vector<128x96xf32> to vector<128x96xbf16>
    %c0_14 = arith.constant 0 : index
    %c0_15 = arith.constant 0 : index
    %30 = vector.load %arg6[%c0_14, %c0_15] : memref<128x96xbf16, #tpu.memory_space<vmem>>, vector<128x96xbf16>
    tpu.vector_store %arg6[%c0_14, %c0_15], %29 {strides = array<i32>} : memref<128x96xbf16, #tpu.memory_space<vmem>>, vector<128x96xbf16>,
    return
  }
  func.func @transform_0(%arg0: i32) -> (i32, i32) {
    %c0_i32 = arith.constant 0 : i32
    %c0_i32_0 = arith.constant 0 : i32
    return %arg0, %c0_i32 : i32, i32
  }
  func.func @transform_1(%arg0: i32) -> (i32, i32) {
    %c0_i32 = arith.constant 0 : i32
    %c0_i32_0 = arith.constant 0 : i32
    %c0_i32_1 = arith.constant 0 : i32
    return %c0_i32, %c0_i32_0 : i32, i32
  }
  func.func @transform_2(%arg0: i32) -> (i32, i32) {
    %c0_i32 = arith.constant 0 : i32
    %c0_i32_0 = arith.constant 0 : i32
    %c0_i32_1 = arith.constant 0 : i32
    return %c0_i32, %c0_i32_0 : i32, i32
  }
  func.func @transform_3(%arg0: i32) -> (i32, i32) {
    %c0_i32 = arith.constant 0 : i32
    %c0_i32_0 = arith.constant 0 : i32
    %c0_i32_1 = arith.constant 0 : i32
    return %c0_i32, %c0_i32_0 : i32, i32
  }
  func.func @transform_4(%arg0: i32) -> (i32, i32) {
    %c0_i32 = arith.constant 0 : i32
    %c0_i32_0 = arith.constant 0 : i32
    %c0_i32_1 = arith.constant 0 : i32
    return %c0_i32, %c0_i32_0 : i32, i32
  }
  func.func @transform_5(%arg0: i32) -> (i32, i32) {
    %c0_i32 = arith.constant 0 : i32
    %c0_i32_0 = arith.constant 0 : i32
    return %arg0, %c0_i32 : i32, i32
  }
}

</mosaic_0001>

<llo_original>
// kernel: tpu_custom_call.1
$region0: #{tpu_custom_call.1}
  #allocation0 [shape = 'u32[]', space=smem, size = 0x4, offset = 0x4, fixed_abs, tag = 'smem constant byte address 0x4 - core index']
  #allocation1 [shape = 'u32[144,128]{1,0:T(1,128)}', space=vmem, size = 0x12000, scoped, tag = 'internal scratch']
  %s0 = inlined_call_operand.vmem [shape: f32[128,32], index: 0, kind: input, shape index: {}]
  %s1 = inlined_call_operand.vmem [shape: f32[1,32], index: 1, kind: input, shape index: {}]
  %s2 = inlined_call_operand.vmem [shape: f32[1,32], index: 2, kind: input, shape index: {}]
  %s3 = inlined_call_operand.vmem [shape: bf16[32,96], index: 3, kind: input, shape index: {}]
  %s4 = inlined_call_operand.vmem [shape: f32[1,96], index: 4, kind: input, shape index: {}]
  %s5 = inlined_call_operand.vmem [shape: bf16[128,96], index: 5, kind: output, shape index: {}]
  %s6 = sld [smem:[#allocation0]]
  $region30: #{tpu_custom_call.1} parent=0
    _
  %s8 = ssub.s32 1, %s6
  %s9 = scalar_select 0, %s8, %s6
  // Predicated region
  $region2: #{tpu_custom_call.1} parent=0 // pred_check
    _
  $region3: #{tpu_custom_call.1} parent=0 // pred_check_branch
    %11 = sbr.rel (0) target = $region5
  $region4: #{tpu_custom_call.1} parent=0 // pred_region
    _
  $region5: #{tpu_custom_call.1} parent=0 // pred_fallthru
    _
  // Predicated region
  $region6: #{tpu_custom_call.1} parent=0 // pred_check
    _
  $region7: #{tpu_custom_call.1} parent=0 // pred_check_branch
    %13 = sbr.rel (0) target = $region9
  $region8: #{tpu_custom_call.1} parent=0 // pred_region
    _
  $region9: #{tpu_custom_call.1} parent=0 // pred_fallthru
    _
  // Predicated region
  $region10: #{tpu_custom_call.1} parent=0 // pred_check
    _
  $region11: #{tpu_custom_call.1} parent=0 // pred_check_branch
    %15 = sbr.rel (0) target = $region13
  $region12: #{tpu_custom_call.1} parent=0 // pred_region
    _
  $region13: #{tpu_custom_call.1} parent=0 // pred_fallthru
    _
  // Predicated region
  $region14: #{tpu_custom_call.1} parent=0 // pred_check
    _
  $region15: #{tpu_custom_call.1} parent=0 // pred_check_branch
    %17 = sbr.rel (0) target = $region17
  $region16: #{tpu_custom_call.1} parent=0 // pred_region
    _
  $region17: #{tpu_custom_call.1} parent=0 // pred_fallthru
    _
  // Predicated region
  $region18: #{tpu_custom_call.1} parent=0 // pred_check
    _
  $region19: #{tpu_custom_call.1} parent=0 // pred_check_branch
    %19 = sbr.rel (0) target = $region21
  $region20: #{tpu_custom_call.1} parent=0 // pred_region
    _
  $region21: #{tpu_custom_call.1} parent=0 // pred_fallthru
    _
  %v21 = vld [vmem:[%s0] sm:$0xff]
  %v22 = vld [vmem:[%s0 + $0x8] sm:$0xff]
  %v23 = vld [vmem:[%s0 + $0x10] sm:$0xff]
  %v24 = vld [vmem:[%s0 + $0x18] sm:$0xff]
  %v25 = vld [vmem:[%s0 + $0x20] sm:$0xff]
  %v26 = vld [vmem:[%s0 + $0x28] sm:$0xff]
  %v27 = vld [vmem:[%s0 + $0x30] sm:$0xff]
  %v28 = vld [vmem:[%s0 + $0x38] sm:$0xff]
  %v29 = vld [vmem:[%s0 + $0x40] sm:$0xff]
  %v30 = vld [vmem:[%s0 + $0x48] sm:$0xff]
  %v31 = vld [vmem:[%s0 + $0x50] sm:$0xff]
  %v32 = vld [vmem:[%s0 + $0x58] sm:$0xff]
  %v33 = vld [vmem:[%s0 + $0x60] sm:$0xff]
  %v34 = vld [vmem:[%s0 + $0x68] sm:$0xff]
  %v35 = vld [vmem:[%s0 + $0x70] sm:$0xff]
  %v36 = vld [vmem:[%s0 + $0x78] sm:$0xff]
  %vm37 = vcmask 261120
  %v38 = vsel %vm37, %v21, 0.0
  %39 = vadd.xlane.f32.xlu0 %v38
  %v40 = vpop.xlane.xlu0 %39
  %v41 = vsel %vm37, %v22, 0.0
  %42 = vadd.xlane.f32.xlu0 %v41
  %v43 = vpop.xlane.xlu0 %42
  %v44 = vsel %vm37, %v23, 0.0
  %45 = vadd.xlane.f32.xlu0 %v44
  %v46 = vpop.xlane.xlu0 %45
  %v47 = vsel %vm37, %v24, 0.0
  %48 = vadd.xlane.f32.xlu0 %v47
  %v49 = vpop.xlane.xlu0 %48
  %v50 = vsel %vm37, %v25, 0.0
  %51 = vadd.xlane.f32.xlu0 %v50
  %v52 = vpop.xlane.xlu0 %51
  %v53 = vsel %vm37, %v26, 0.0
  %54 = vadd.xlane.f32.xlu0 %v53
  %v55 = vpop.xlane.xlu0 %54
  %v56 = vsel %vm37, %v27, 0.0
  %57 = vadd.xlane.f32.xlu0 %v56
  %v58 = vpop.xlane.xlu0 %57
  %v59 = vsel %vm37, %v28, 0.0
  %60 = vadd.xlane.f32.xlu0 %v59
  %v61 = vpop.xlane.xlu0 %60
  %v62 = vsel %vm37, %v29, 0.0
  %63 = vadd.xlane.f32.xlu0 %v62
  %v64 = vpop.xlane.xlu0 %63
  %v65 = vsel %vm37, %v30, 0.0
  %66 = vadd.xlane.f32.xlu0 %v65
  %v67 = vpop.xlane.xlu0 %66
  %v68 = vsel %vm37, %v31, 0.0
  %69 = vadd.xlane.f32.xlu0 %v68
  %v70 = vpop.xlane.xlu0 %69
  %v71 = vsel %vm37, %v32, 0.0
  %72 = vadd.xlane.f32.xlu0 %v71
  %v73 = vpop.xlane.xlu0 %72
  %v74 = vsel %vm37, %v33, 0.0
  %75 = vadd.xlane.f32.xlu0 %v74
  %v76 = vpop.xlane.xlu0 %75
  %v77 = vsel %vm37, %v34, 0.0
  %78 = vadd.xlane.f32.xlu0 %v77
  %v79 = vpop.xlane.xlu0 %78
  %v80 = vsel %vm37, %v35, 0.0
  %81 = vadd.xlane.f32.xlu0 %v80
  %v82 = vpop.xlane.xlu0 %81
  %v83 = vsel %vm37, %v36, 0.0
  %84 = vadd.xlane.f32.xlu0 %v83
  %v85 = vpop.xlane.xlu0 %84
  %v86 = vrcp.pop 32.0
  %v87 = vmul.f32 %v40, %v86
  %v88 = vmul.f32 %v43, %v86
  %v89 = vmul.f32 %v46, %v86
  %v90 = vmul.f32 %v49, %v86
  %v91 = vmul.f32 %v52, %v86
  %v92 = vmul.f32 %v55, %v86
  %v93 = vmul.f32 %v58, %v86
  %v94 = vmul.f32 %v61, %v86
  %v95 = vmul.f32 %v64, %v86
  %v96 = vmul.f32 %v67, %v86
  %v97 = vmul.f32 %v70, %v86
  %v98 = vmul.f32 %v73, %v86
  %v99 = vmul.f32 %v76, %v86
  %v100 = vmul.f32 %v79, %v86
  %v101 = vmul.f32 %v82, %v86
  %v102 = vmul.f32 %v85, %v86
  %v103 = vsub.f32 %v21, %v87
  %v104 = vsub.f32 %v22, %v88
  %v105 = vsub.f32 %v23, %v89
  %v106 = vsub.f32 %v24, %v90
  %v107 = vsub.f32 %v25, %v91
  %v108 = vsub.f32 %v26, %v92
  %v109 = vsub.f32 %v27, %v93
  %v110 = vsub.f32 %v28, %v94
  %v111 = vsub.f32 %v29, %v95
  %v112 = vsub.f32 %v30, %v96
  %v113 = vsub.f32 %v31, %v97
  %v114 = vsub.f32 %v32, %v98
  %v115 = vsub.f32 %v33, %v99
  %v116 = vsub.f32 %v34, %v100
  %v117 = vsub.f32 %v35, %v101
  %v118 = vsub.f32 %v36, %v102
  %v119 = vmul.f32 %v103, %v103
  %v120 = vmul.f32 %v104, %v104
  %v121 = vmul.f32 %v105, %v105
  %v122 = vmul.f32 %v106, %v106
  %v123 = vmul.f32 %v107, %v107
  %v124 = vmul.f32 %v108, %v108
  %v125 = vmul.f32 %v109, %v109
  %v126 = vmul.f32 %v110, %v110
  %v127 = vmul.f32 %v111, %v111
  %v128 = vmul.f32 %v112, %v112
  %v129 = vmul.f32 %v113, %v113
  %v130 = vmul.f32 %v114, %v114
  %v131 = vmul.f32 %v115, %v115
  %v132 = vmul.f32 %v116, %v116
  %v133 = vmul.f32 %v117, %v117
  %v134 = vmul.f32 %v118, %v118
  %v135 = vsel %vm37, %v119, 0.0
  %136 = vadd.xlane.f32.xlu0 %v135
  %v137 = vpop.xlane.xlu0 %136
  %v138 = vsel %vm37, %v120, 0.0
  %139 = vadd.xlane.f32.xlu0 %v138
  %v140 = vpop.xlane.xlu0 %139
  %v141 = vsel %vm37, %v121, 0.0
  %142 = vadd.xlane.f32.xlu0 %v141
  %v143 = vpop.xlane.xlu0 %142
  %v144 = vsel %vm37, %v122, 0.0
  %145 = vadd.xlane.f32.xlu0 %v144
  %v146 = vpop.xlane.xlu0 %145
  %v147 = vsel %vm37, %v123, 0.0
  %148 = vadd.xlane.f32.xlu0 %v147
  %v149 = vpop.xlane.xlu0 %148
  %v150 = vsel %vm37, %v124, 0.0
  %151 = vadd.xlane.f32.xlu0 %v150
  %v152 = vpop.xlane.xlu0 %151
  %v153 = vsel %vm37, %v125, 0.0
  %154 = vadd.xlane.f32.xlu0 %v153
  %v155 = vpop.xlane.xlu0 %154
  %v156 = vsel %vm37, %v126, 0.0
  %157 = vadd.xlane.f32.xlu0 %v156
  %v158 = vpop.xlane.xlu0 %157
  %v159 = vsel %vm37, %v127, 0.0
  %160 = vadd.xlane.f32.xlu0 %v159
  %v161 = vpop.xlane.xlu0 %160
  %v162 = vsel %vm37, %v128, 0.0
  %163 = vadd.xlane.f32.xlu0 %v162
  %v164 = vpop.xlane.xlu0 %163
  %v165 = vsel %vm37, %v129, 0.0
  %166 = vadd.xlane.f32.xlu0 %v165
  %v167 = vpop.xlane.xlu0 %166
  %v168 = vsel %vm37, %v130, 0.0
  %169 = vadd.xlane.f32.xlu0 %v168
  %v170 = vpop.xlane.xlu0 %169
  %v171 = vsel %vm37, %v131, 0.0
  %172 = vadd.xlane.f32.xlu0 %v171
  %v173 = vpop.xlane.xlu0 %172
  %v174 = vsel %vm37, %v132, 0.0
  %175 = vadd.xlane.f32.xlu0 %v174
  %v176 = vpop.xlane.xlu0 %175
  %v177 = vsel %vm37, %v133, 0.0
  %178 = vadd.xlane.f32.xlu0 %v177
  %v179 = vpop.xlane.xlu0 %178
  %v180 = vsel %vm37, %v134, 0.0
  %181 = vadd.xlane.f32.xlu0 %v180
  %v182 = vpop.xlane.xlu0 %181
  %v183 = vmul.f32 %v137, %v86
  %v184 = vmul.f32 %v140, %v86
  %v185 = vmul.f32 %v143, %v86
  %v186 = vmul.f32 %v146, %v86
  %v187 = vmul.f32 %v149, %v86
  %v188 = vmul.f32 %v152, %v86
  %v189 = vmul.f32 %v155, %v86
  %v190 = vmul.f32 %v158, %v86
  %v191 = vmul.f32 %v161, %v86
  %v192 = vmul.f32 %v164, %v86
  %v193 = vmul.f32 %v167, %v86
  %v194 = vmul.f32 %v170, %v86
  %v195 = vmul.f32 %v173, %v86
  %v196 = vmul.f32 %v176, %v86
  %v197 = vmul.f32 %v179, %v86
  %v198 = vmul.f32 %v182, %v86
  %v199 = vadd.f32 %v183, 1e-05
  %v200 = vadd.f32 %v184, 1e-05
  %v201 = vadd.f32 %v185, 1e-05
  %v202 = vadd.f32 %v186, 1e-05
  %v203 = vadd.f32 %v187, 1e-05
  %v204 = vadd.f32 %v188, 1e-05
  %v205 = vadd.f32 %v189, 1e-05
  %v206 = vadd.f32 %v190, 1e-05
  %v207 = vadd.f32 %v191, 1e-05
  %v208 = vadd.f32 %v192, 1e-05
  %v209 = vadd.f32 %v193, 1e-05
  %v210 = vadd.f32 %v194, 1e-05
  %v211 = vadd.f32 %v195, 1e-05
  %v212 = vadd.f32 %v196, 1e-05
  %v213 = vadd.f32 %v197, 1e-05
  %v214 = vadd.f32 %v198, 1e-05
  %v215 = vrsqrt.pop %v199
  %v216 = vrsqrt.pop %v200
  %v217 = vrsqrt.pop %v201
  %v218 = vrsqrt.pop %v202
  %v219 = vrsqrt.pop %v203
  %v220 = vrsqrt.pop %v204
  %v221 = vrsqrt.pop %v205
  %v222 = vrsqrt.pop %v206
  %v223 = vrsqrt.pop %v207
  %v224 = vrsqrt.pop %v208
  %v225 = vrsqrt.pop %v209
  %v226 = vrsqrt.pop %v210
  %v227 = vrsqrt.pop %v211
  %v228 = vrsqrt.pop %v212
  %v229 = vrsqrt.pop %v213
  %v230 = vrsqrt.pop %v214
  %v231 = vmul.f32 %v103, %v215
  %v232 = vmul.f32 %v104, %v216
  %v233 = vmul.f32 %v105, %v217
  %v234 = vmul.f32 %v106, %v218
  %v235 = vmul.f32 %v107, %v219
  %v236 = vmul.f32 %v108, %v220
  %v237 = vmul.f32 %v109, %v221
  %v238 = vmul.f32 %v110, %v222
  %v239 = vmul.f32 %v111, %v223
  %v240 = vmul.f32 %v112, %v224
  %v241 = vmul.f32 %v113, %v225
  %v242 = vmul.f32 %v114, %v226
  %v243 = vmul.f32 %v115, %v227
  %v244 = vmul.f32 %v116, %v228
  %v245 = vmul.f32 %v117, %v229
  %v246 = vmul.f32 %v118, %v230
  %v247 = vld [vmem:[%s1] sm:$0x1]
  %v249 = vlaneseq
  %v250 = vshrl.u32 %v249, 7
  %v251 = vsub.s32 0, %v250
  %v252 = vrot.slane %v247, %v251
  %v254 = vmul.f32 %v231, %v252
  %v255 = vmul.f32 %v232, %v252
  %v256 = vmul.f32 %v233, %v252
  %v257 = vmul.f32 %v234, %v252
  %v258 = vmul.f32 %v235, %v252
  %v259 = vmul.f32 %v236, %v252
  %v260 = vmul.f32 %v237, %v252
  %v261 = vmul.f32 %v238, %v252
  %v262 = vmul.f32 %v239, %v252
  %v263 = vmul.f32 %v240, %v252
  %v264 = vmul.f32 %v241, %v252
  %v265 = vmul.f32 %v242, %v252
  %v266 = vmul.f32 %v243, %v252
  %v267 = vmul.f32 %v244, %v252
  %v268 = vmul.f32 %v245, %v252
  %v269 = vmul.f32 %v246, %v252
  %v270 = vld [vmem:[%s2] sm:$0x1]
  %v272 = vlaneseq
  %v273 = vshrl.u32 %v272, 7
  %v274 = vsub.s32 0, %v273
  %v275 = vrot.slane %v270, %v274
  %v277 = vadd.f32 %v254, %v275
  %v278 = vadd.f32 %v255, %v275
  %v279 = vadd.f32 %v256, %v275
  %v280 = vadd.f32 %v257, %v275
  %v281 = vadd.f32 %v258, %v275
  %v282 = vadd.f32 %v259, %v275
  %v283 = vadd.f32 %v260, %v275
  %v284 = vadd.f32 %v261, %v275
  %v285 = vadd.f32 %v262, %v275
  %v286 = vadd.f32 %v263, %v275
  %v287 = vadd.f32 %v264, %v275
  %v288 = vadd.f32 %v265, %v275
  %v289 = vadd.f32 %v266, %v275
  %v290 = vadd.f32 %v267, %v275
  %v291 = vadd.f32 %v268, %v275
  %v292 = vadd.f32 %v269, %v275
  %v293 = vpack.c.bf16 %v278, %v277
  %v294 = vpack.c.bf16 %v280, %v279
  %v295 = vpack.c.bf16 %v282, %v281
  %v296 = vpack.c.bf16 %v284, %v283
  %v297 = vpack.c.bf16 %v286, %v285
  %v298 = vpack.c.bf16 %v288, %v287
  %v299 = vpack.c.bf16 %v290, %v289
  %v300 = vpack.c.bf16 %v292, %v291
  %v301 = vld [vmem:[%s3] sm:$0xf]
  %v302 = vld [vmem:[%s3 + $0x4] sm:$0xf]
  %v303 = vld [vmem:[%s3 + $0x8] sm:$0xf]
  %v304 = vld [vmem:[%s3 + $0xc] sm:$0xf]
  %v305 = vld [vmem:[%s4] sm:$0x1]
  %v307 = vlaneseq
  %v308 = vshrl.u32 %v307, 7
  %v309 = vsub.s32 0, %v308
  %v310 = vrot.slane %v305, %v309
  %v316 = vunpack.c.l.b16 %v301
  %v317 = vunpack.c.l.b16 %v302
  %v318 = vunpack.c.l.b16 %v303
  %v319 = vunpack.c.l.b16 %v304
  %v320 = vpack.c.b16 %v317, %v316
  %v321 = vpack.c.b16 %v319, %v318
  %v325 = vsel %vm37, %v293, 0
  %v328 = vsel %vm37, %v294, 0
  %v331 = vsel %vm37, %v295, 0
  %v334 = vsel %vm37, %v296, 0
  %v337 = vsel %vm37, %v297, 0
  %v340 = vsel %vm37, %v298, 0
  %v343 = vsel %vm37, %v299, 0
  %v346 = vsel %vm37, %v300, 0
  %348 = vmatprep.subr.bf16.mxu0 0
  %349 = vmatpush1.bf16.msra.mxu0 %v320
  %350 = vmatprep.subr.bf16.mxu0 0
  %351 = vmatpush1.bf16.msra.mxu0 %v321
  %352 = vmatprep.subr.bf16.mxu0 0
  %353 = vmatpush1.bf16.msra.mxu0 0
  %354 = vmatprep.subr.bf16.mxu0 0
  %355 = vmatpush1.bf16.msra.mxu0 0
  %356 = vmatprep.subr.bf16.mxu0 0
  %357 = vmatpush1.bf16.msra.mxu0 0
  %358 = vmatprep.subr.bf16.mxu0 0
  %359 = vmatpush1.bf16.msra.mxu0 0
  %360 = vmatprep.subr.bf16.mxu0 0
  %361 = vmatpush1.bf16.msra.mxu0 0
  %362 = vmatprep.subr.bf16.mxu0 0
  %363 = vmatpush1.bf16.msra.mxu0 0
  %364 = vmatprep.subr.bf16.mxu0 0
  %365 = vmatpush1.bf16.msra.mxu0 0
  %366 = vmatprep.subr.bf16.mxu0 0
  %367 = vmatpush1.bf16.msra.mxu0 0
  %368 = vmatprep.subr.bf16.mxu0 0
  %369 = vmatpush1.bf16.msra.mxu0 0
  %370 = vmatprep.subr.bf16.mxu0 0
  %371 = vmatpush1.bf16.msra.mxu0 0
  %372 = vmatprep.subr.bf16.mxu0 0
  %373 = vmatpush1.bf16.msra.mxu0 0
  %374 = vmatprep.subr.bf16.mxu0 0
  %375 = vmatpush1.bf16.msra.mxu0 0
  %376 = vmatprep.subr.bf16.mxu0 0
  %377 = vmatpush1.bf16.msra.mxu0 0
  %378 = vmatprep.subr.bf16.mxu0 0
  %379 = vmatpush1.bf16.msra.mxu0 0
  %380 = vmatprep.mubr.bf16.mxu0 0
  %381 = vmatmul.mubr.bf16.gmra.mrb[0].mxu0 %v325
  %v382 = vpop.f32.mrb[0].mxu0
  %v383 = vadd.f32 %v310, %v382
  %v384 = vpop.f32.mrb[0].mxu0
  %v385 = vpop.f32.mrb[0].mxu0
  %v386 = vadd.f32 %v310, %v385
  %v387 = vpop.f32.mrb[0].mxu0
  %388 = vmatprep.mubr.bf16.mxu0 0
  %389 = vmatmul.mubr.bf16.gmra.mrb[0].mxu0 %v328
  %v390 = vpop.f32.mrb[0].mxu0
  %v391 = vadd.f32 %v310, %v390
  %v392 = vpop.f32.mrb[0].mxu0
  %v393 = vpop.f32.mrb[0].mxu0
  %v394 = vadd.f32 %v310, %v393
  %v395 = vpop.f32.mrb[0].mxu0
  %396 = vmatprep.mubr.bf16.mxu0 0
  %397 = vmatmul.mubr.bf16.gmra.mrb[0].mxu0 %v331
  %v398 = vpop.f32.mrb[0].mxu0
  %v399 = vadd.f32 %v310, %v398
  %v400 = vpop.f32.mrb[0].mxu0
  %v401 = vpop.f32.mrb[0].mxu0
  %v402 = vadd.f32 %v310, %v401
  %v403 = vpop.f32.mrb[0].mxu0
  %404 = vmatprep.mubr.bf16.mxu0 0
  %405 = vmatmul.mubr.bf16.gmra.mrb[0].mxu0 %v334
  %v406 = vpop.f32.mrb[0].mxu0
  %v407 = vadd.f32 %v310, %v406
  %v408 = vpop.f32.mrb[0].mxu0
  %v409 = vpop.f32.mrb[0].mxu0
  %v410 = vadd.f32 %v310, %v409
  %v411 = vpop.f32.mrb[0].mxu0
  %412 = vmatprep.mubr.bf16.mxu0 0
  %413 = vmatmul.mubr.bf16.gmra.mrb[0].mxu0 %v337
  %v414 = vpop.f32.mrb[0].mxu0
  %v415 = vadd.f32 %v310, %v414
  %v416 = vpop.f32.mrb[0].mxu0
  %v417 = vpop.f32.mrb[0].mxu0
  %v418 = vadd.f32 %v310, %v417
  %v419 = vpop.f32.mrb[0].mxu0
  %420 = vmatprep.mubr.bf16.mxu0 0
  %421 = vmatmul.mubr.bf16.gmra.mrb[0].mxu0 %v340
  %v422 = vpop.f32.mrb[0].mxu0
  %v423 = vadd.f32 %v310, %v422
  %v424 = vpop.f32.mrb[0].mxu0
  %v425 = vpop.f32.mrb[0].mxu0
  %v426 = vadd.f32 %v310, %v425
  %v427 = vpop.f32.mrb[0].mxu0
  %428 = vmatprep.mubr.bf16.mxu0 0
  %429 = vmatmul.mubr.bf16.gmra.mrb[0].mxu0 %v343
  %v430 = vpop.f32.mrb[0].mxu0
  %v431 = vadd.f32 %v310, %v430
  %v432 = vpop.f32.mrb[0].mxu0
  %v433 = vpop.f32.mrb[0].mxu0
  %v434 = vadd.f32 %v310, %v433
  %v435 = vpop.f32.mrb[0].mxu0
  %436 = vmatprep.mubr.bf16.mxu0 0
  %437 = vmatmul.mubr.bf16.gmra.mrb[0].mxu0 %v346
  %v438 = vpop.f32.mrb[0].mxu0
  %v439 = vadd.f32 %v310, %v438
  %v440 = vpop.f32.mrb[0].mxu0
  %v441 = vpop.f32.mrb[0].mxu0
  %v442 = vadd.f32 %v310, %v441
  %v443 = vpop.f32.mrb[0].mxu0
  %444 = vdwg.mxu0
  %v445 = vpack.c.bf16 %v386, %v383
  %v446 = vpack.c.bf16 %v394, %v391
  %v447 = vpack.c.bf16 %v402, %v399
  %v448 = vpack.c.bf16 %v410, %v407
  %v449 = vpack.c.bf16 %v418, %v415
  %v450 = vpack.c.bf16 %v426, %v423
  %v451 = vpack.c.bf16 %v434, %v431
  %v452 = vpack.c.bf16 %v442, %v439
  %v461 = vunpack.c.l.b16 %v445
  %v462 = vunpack.c.h.b16 %v445
  %v463 = vunpack.c.l.b16 %v446
  %v464 = vunpack.c.h.b16 %v446
  %v465 = vunpack.c.l.b16 %v447
  %v466 = vunpack.c.h.b16 %v447
  %v467 = vunpack.c.l.b16 %v448
  %v468 = vunpack.c.h.b16 %v448
  %v469 = vunpack.c.l.b16 %v449
  %v470 = vunpack.c.h.b16 %v449
  %v471 = vunpack.c.l.b16 %v450
  %v472 = vunpack.c.h.b16 %v450
  %v473 = vunpack.c.l.b16 %v451
  %v474 = vunpack.c.h.b16 %v451
  %v475 = vunpack.c.l.b16 %v452
  %v476 = vunpack.c.h.b16 %v452
  %v477 = vpack.c.b16 %v461, %v461
  %v478 = vpack.c.b16 %v462, %v462
  %v479 = vpack.c.b16 %v463, %v463
  %v480 = vpack.c.b16 %v464, %v464
  %v481 = vpack.c.b16 %v465, %v465
  %v482 = vpack.c.b16 %v466, %v466
  %v483 = vpack.c.b16 %v467, %v467
  %v484 = vpack.c.b16 %v468, %v468
  %v485 = vpack.c.b16 %v469, %v469
  %v486 = vpack.c.b16 %v470, %v470
  %v487 = vpack.c.b16 %v471, %v471
  %v488 = vpack.c.b16 %v472, %v472
  %v489 = vpack.c.b16 %v473, %v473
  %v490 = vpack.c.b16 %v474, %v474
  %v491 = vpack.c.b16 %v475, %v475
  %v492 = vpack.c.b16 %v476, %v476
  %vm509 = vcmask 781312
  %510 = vst.msk [vmem:[%s5] sm:$0xf] %vm509, %v477
  %511 = vst.msk [vmem:[%s5 + $0x4] sm:$0xf] %vm509, %v478
  %512 = vst.msk [vmem:[%s5 + $0x8] sm:$0xf] %vm509, %v479
  %513 = vst.msk [vmem:[%s5 + $0xc] sm:$0xf] %vm509, %v480
  %514 = vst.msk [vmem:[%s5 + $0x10] sm:$0xf] %vm509, %v481
  %515 = vst.msk [vmem:[%s5 + $0x14] sm:$0xf] %vm509, %v482
  %516 = vst.msk [vmem:[%s5 + $0x18] sm:$0xf] %vm509, %v483
  %517 = vst.msk [vmem:[%s5 + $0x1c] sm:$0xf] %vm509, %v484
  %518 = vst.msk [vmem:[%s5 + $0x20] sm:$0xf] %vm509, %v485
  %519 = vst.msk [vmem:[%s5 + $0x24] sm:$0xf] %vm509, %v486
  %520 = vst.msk [vmem:[%s5 + $0x28] sm:$0xf] %vm509, %v487
  %521 = vst.msk [vmem:[%s5 + $0x2c] sm:$0xf] %vm509, %v488
  %522 = vst.msk [vmem:[%s5 + $0x30] sm:$0xf] %vm509, %v489
  %523 = vst.msk [vmem:[%s5 + $0x34] sm:$0xf] %vm509, %v490
  %524 = vst.msk [vmem:[%s5 + $0x38] sm:$0xf] %vm509, %v491
  %525 = vst.msk [vmem:[%s5 + $0x3c] sm:$0xf] %vm509, %v492
  // Predicated region
  $region22: #{tpu_custom_call.1} parent=0 // pred_check
    _
  $region23: #{tpu_custom_call.1} parent=0 // pred_check_branch
    %527 = sbr.rel (0) target = $region25
  $region24: #{tpu_custom_call.1} parent=0 // pred_region
    _
  $region25: #{tpu_custom_call.1} parent=0 // pred_fallthru
    _
  // Predicated region
  $region26: #{tpu_custom_call.1} parent=0 // pred_check
    _
  $region27: #{tpu_custom_call.1} parent=0 // pred_check_branch
    %529 = sbr.rel (0) target = $region29
  $region28: #{tpu_custom_call.1} parent=0 // pred_region
    _
  $region29: #{tpu_custom_call.1} parent=0 // pred_fallthru
    _

</llo_original>
